<compile_context>
chip_gen: v6e
topology: v6e:2x2x1
jax: 0.10.0
libtpu: 0.0.40
codegen_flags: <defaults>
</compile_context>

<pallas_src>
import functools

import jax
import jax.numpy as jnp
from jax.experimental import pallas as pl
from jax.experimental.pallas import tpu as pltpu


def _round_up(x, m):
    return ((x + m - 1) // m) * m


def _tpu_plan():
    """Generation-aware (tile_m, tile_n, vmem_limit_bytes)."""
    kind = ""
    try:
        kind = jax.devices()[0].device_kind.lower()
    except Exception:
        pass
    if "v7" in kind:
        # 64 MiB physical VMEM per TC -> keep scoped limit at 48 MiB.
        return 1024, 1024, 48 * 1024 * 1024
    if "v6" in kind or "v5p" in kind:
        # 128 MiB physical VMEM; large tiles flip the kernel compute-bound.
        return 1024, 1024, 100 * 1024 * 1024
    # v5e / v4 / older / unknown: crossover is tm~240, keep tiles modest.
    return 512, 512, 64 * 1024 * 1024


def prepare_decoder_weight(dec_weight, *, tile_n=None, dtype=jnp.bfloat16):
    """One-time (outside the hot path) preprocessing of the nn.Linear decoder weight.

    dec_weight: (O, H) as stored by PyTorch nn.Linear.
    Returns w_panels of shape (O_pad // tn, H, tn), cast to `dtype`, zero-padded along
    the output dim, with each (H, tn) panel contiguous in HBM so the kernel streams
    one large linear DMA per grid step.
    """
    O, H = dec_weight.shape
    if tile_n is None:
        tile_n = _tpu_plan()[1]
    tn = min(tile_n, _round_up(O, 128))       # lane-dense output tiles
    O_pad = _round_up(O, tn)
    w = jnp.asarray(dec_weight, dtype=dtype).T            # (H, O)
    if O_pad != O:
        w = jnp.pad(w, ((0, 0), (0, O_pad - O)))
    # (H, O_pad) -> (n_panels, H, tn); materialized row-major => contiguous panels.
    w = w.reshape(H, O_pad // tn, tn).transpose(1, 0, 2)
    return w


def _modelling_head_kernel(x_ref, gamma_ref, beta_ref, w_ref, o_ref, xn_ref, *, eps):
    # x_ref:     (tm, H)   token tile (same block for all j -> fetched once per i)
    # gamma_ref: (1, H)    LayerNorm weight (resident)
    # beta_ref:  (1, H)    LayerNorm bias (resident)
    # w_ref:     (H, tn)   streamed contiguous decoder-weight panel (bf16)
    # o_ref:     (tm, tn)  output tile
    # xn_ref:    (tm, H)   VMEM scratch caching the LayerNormed tile (matmul dtype)

    @pl.when(pl.program_id(1) == 0)
    def _():
        x = x_ref[...].astype(jnp.float32)
        mean = jnp.mean(x, axis=-1, keepdims=True)
        xc = x - mean
        # Two-pass centered variance (cancellation-safe), matches nn.LayerNorm.
        var = jnp.mean(xc * xc, axis=-1, keepdims=True)
        inv = jax.lax.rsqrt(var + eps)
        xn = xc * inv
        xn = xn * gamma_ref[...].astype(jnp.float32) + beta_ref[...].astype(jnp.float32)
        xn_ref[...] = xn.astype(xn_ref.dtype)

    # Inner loop: pure MXU matmul with fp32 accumulation.
    o_ref[...] = jnp.dot(
        xn_ref[...], w_ref[...], preferred_element_type=jnp.float32
    ).astype(o_ref.dtype)


def modelling_head(features, ln_weight, ln_bias, w_panels, out_size, *, eps=1e-5,
                   tile_m=None, out_dtype=None, vmem_limit_bytes=None):
    """Fused LayerNorm + Linear(bias=False) head.

    features:  (B, S, H)
    ln_weight: (H,)
    ln_bias:   (H,)
    w_panels:  (n_panels, H, tn)  from prepare_decoder_weight() (done ONCE, outside
               the hot path).
    out_size:  original (unpadded) output dimension O.
    out_dtype: defaults to features.dtype (module semantics); pass jnp.bfloat16 to
               halve the logit store stream if the consumer accepts it.
    """
    B, S, H = features.shape
    n_panels, Hw, tn = w_panels.shape
    assert Hw == H, (Hw, H)
    O_pad = n_panels * tn
    assert out_size <= O_pad, (out_size, O_pad)
    M = B * S

    plan_tm, _, plan_vmem = _tpu_plan()
    if tile_m is None:
        tile_m = plan_tm
    if vmem_limit_bytes is None:
        vmem_limit_bytes = plan_vmem
    if out_dtype is None:
        out_dtype = features.dtype

    # ---- tile plan ------------------------------------------------------------
    # Row tile: multiple of 8 sublanes.  Keep >= 2 row tiles when there is enough
    # work so the "parallel" i axis can feed both TensorCores on v7x megacore.
    tm = min(tile_m, _round_up(M, 8))
    if M > 512 and pl.cdiv(M, tm) < 2:
        tm = min(tile_m, _round_up(pl.cdiv(M, 2), 8))
    M_pad = _round_up(M, tm)

    x2d = features.reshape(M, H)
    if M_pad != M:
        # Padded rows produce xn = beta (nonzero logits); correctness relies on the
        # final [:M] slice below.
        x2d = jnp.pad(x2d, ((0, M_pad - M), (0, 0)))
    # TODO(synk): on v7x, optionally cast x2d to bf16 here (upcast inside the LN
    # block) to halve the resident x tile under the 64 MiB VMEM budget.

    gamma = ln_weight.reshape(1, H)
    beta = ln_bias.reshape(1, H)

    grid = (M_pad // tm, n_panels)
    kernel = functools.partial(_modelling_head_kernel, eps=eps)

    cost = pl.CostEstimate(
        flops=2 * M_pad * H * O_pad,
        transcendentals=M_pad,  # one rsqrt per row
        bytes_accessed=(
            x2d.size * x2d.dtype.itemsize
            + grid[0] * w_panels.size * w_panels.dtype.itemsize   # weight re-read per row tile
            + M_pad * O_pad * jnp.dtype(out_dtype).itemsize
        ),
    )

    out2d = pl.pallas_call(
        kernel,
        out_shape=jax.ShapeDtypeStruct((M_pad, O_pad), out_dtype),
        grid_spec=pltpu.PrefetchScalarGridSpec(
            num_scalar_prefetch=0,
            grid=grid,
            in_specs=[
                pl.BlockSpec((tm, H), lambda i, j: (i, 0)),          # token tile (reused over j)
                pl.BlockSpec((1, H), lambda i, j: (0, 0)),           # LN gamma (resident)
                pl.BlockSpec((1, H), lambda i, j: (0, 0)),           # LN beta  (resident)
                pl.BlockSpec((None, H, tn), lambda i, j: (j, 0, 0)), # contiguous weight panel
            ],
            out_specs=pl.BlockSpec((tm, tn), lambda i, j: (i, j)),
            scratch_shapes=[pltpu.VMEM((tm, H), w_panels.dtype)],    # cached LayerNormed tile
        ),
        compiler_params=pltpu.CompilerParams(
            # j must stay "arbitrary" (sequential): the xn_ref cache written at j==0
            # is consumed by all later j of the same i.
            dimension_semantics=("parallel", "arbitrary"),
            vmem_limit_bytes=vmem_limit_bytes,
        ),
        cost_estimate=cost,
    )(x2d, gamma, beta, w_panels)

    return out2d[:M, :out_size].reshape(B, S, out_size)


def _reference(features, ln_weight, ln_bias, dec_weight_t, *, eps=1e-5,
               matmul_dtype=jnp.float32):
    x = features.astype(jnp.float32)
    mean = jnp.mean(x, axis=-1, keepdims=True)
    var = jnp.mean((x - mean) ** 2, axis=-1, keepdims=True)
    xn = (x - mean) * jax.lax.rsqrt(var + eps)
    xn = xn * ln_weight.astype(jnp.float32) + ln_bias.astype(jnp.float32)
    y = jnp.dot(xn.astype(matmul_dtype), dec_weight_t.astype(matmul_dtype),
                preferred_element_type=jnp.float32)
    return y.astype(features.dtype)


if __name__ == "__main__":
    # Small shapes consistent with the module: batch=2, seq=8, hidden=32, out_size=16.
    B, S, H, O = 2, 8, 32, 16
    eps = 1e-5

    key = jax.random.PRNGKey(0)
    k_feat, k_gamma, k_beta, k_dec = jax.random.split(key, 4)

    features = jax.random.normal(k_feat, (B, S, H), dtype=jnp.float32)
    ln_weight = 1.0 + 0.01 * jax.random.normal(k_gamma, (H,), dtype=jnp.float32)
    ln_bias = 0.01 * jax.random.normal(k_beta, (H,), dtype=jnp.float32)
    dec_weight = 0.02 * jax.random.normal(k_dec, (O, H), dtype=jnp.float32)  # PyTorch (out, in)

    # One-time weight preprocessing (transpose, bf16 cast, pad, panel-contiguous layout).
    w_panels = prepare_decoder_weight(dec_weight)
    w_panels = jax.block_until_ready(w_panels)

    out = modelling_head(features, ln_weight, ln_bias, w_panels, O, eps=eps)
    out = jax.block_until_ready(out)
    assert out.shape == (B, S, O), out.shape

    # Reference with the SAME numerics as the kernel (fp32 LN, bf16 matmul operands,
    # fp32 accumulation) -> tight tolerance.
    ref_bf16 = _reference(features, ln_weight, ln_bias,
                          jnp.asarray(dec_weight.T, jnp.bfloat16), eps=eps,
                          matmul_dtype=jnp.bfloat16)
    assert jnp.allclose(out, ref_bf16, atol=2e-3, rtol=2e-3), \
        float(jnp.max(jnp.abs(out - ref_bf16)))

    # Loose cross-check against the pure-fp32 module semantics (bf16 operand rounding).
    ref_f32 = _reference(features, ln_weight, ln_bias,
                         jnp.asarray(dec_weight.T, jnp.float32), eps=eps,
                         matmul_dtype=jnp.float32)
    assert jnp.allclose(out, ref_f32, atol=2e-2, rtol=2e-2), \
        float(jnp.max(jnp.abs(out - ref_f32)))

    print("KERNEL_OK")
</pallas_src>

<mosaic_0001>
module attributes {stable_mosaic.version = 11 : i64} {
  func.func @_modelling_head_kernel(%arg0: i32, %arg1: i32, %arg2: memref<16x32xf32, #tpu.memory_space<vmem>>, %arg3: memref<1x32xf32, #tpu.memory_space<vmem>>, %arg4: memref<1x32xf32, #tpu.memory_space<vmem>>, %arg5: memref<1x32x128xbf16, #tpu.memory_space<vmem>>, %arg6: memref<16x128xf32, #tpu.memory_space<vmem>>, %arg7: memref<16x32xbf16, #tpu.memory_space<vmem>>) attributes {dimension_semantics = [#tpu.dimension_semantics<parallel>, #tpu.dimension_semantics<arbitrary>], iteration_bounds = array<i64: 1, 1>, scalar_prefetch = 0 : i64, scratch_operands = 1 : i64, tpu.core_type = #tpu.core_type<tc>, window_params = [{transform_indices = @transform_0, window_bounds = array<i64: 16, 32>}, {pipeline_mode = #tpu.pipeline_mode<synchronous>, transform_indices = @transform_1, window_bounds = array<i64: 1, 32>}, {pipeline_mode = #tpu.pipeline_mode<synchronous>, transform_indices = @transform_2, window_bounds = array<i64: 1, 32>}, {transform_indices = @transform_3, window_bounds = array<i64: 1, 32, 128>}, {transform_indices = @transform_4, window_bounds = array<i64: 16, 128>}]} {
    %c0_i32 = arith.constant 0 : i32
    %0 = arith.cmpi eq, %arg1, %c0_i32 : i32
    %1 = arith.extui %0 : i1 to i32
    %c0_i32_0 = arith.constant 0 : i32
    %2 = arith.cmpi ne, %1, %c0_i32_0 : i32
    scf.if %2 {
      %c0_7 = arith.constant 0 : index
      %c0_8 = arith.constant 0 : index
      %8 = vector.load %arg2[%c0_7, %c0_8] : memref<16x32xf32, #tpu.memory_space<vmem>>, vector<16x32xf32>
      %cst_9 = arith.constant dense<0.000000e+00> : vector<16xf32>
      %9 = vector.multi_reduction <add>, %8, %cst_9 [1] : vector<16x32xf32> to vector<16xf32>
      %10 = vector.shape_cast %9 : vector<16xf32> to vector<16x1xf32>
      %cst_10 = arith.constant 3.200000e+01 : f32
      %11 = vector.broadcast %cst_10 : f32 to vector<16x1xf32>
      %12 = arith.divf %10, %11 : vector<16x1xf32>
      %13 = vector.broadcast %12 : vector<16x1xf32> to vector<16x32xf32>
      %14 = arith.subf %8, %13 : vector<16x32xf32>
      %15 = arith.mulf %14, %14 : vector<16x32xf32>
      %cst_11 = arith.constant dense<0.000000e+00> : vector<16xf32>
      %16 = vector.multi_reduction <add>, %15, %cst_11 [1] : vector<16x32xf32> to vector<16xf32>
      %17 = vector.shape_cast %16 : vector<16xf32> to vector<16x1xf32>
      %cst_12 = arith.constant 3.200000e+01 : f32
      %18 = vector.broadcast %cst_12 : f32 to vector<16x1xf32>
      %19 = arith.divf %17, %18 : vector<16x1xf32>
      %cst_13 = arith.constant 9.99999974E-6 : f32
      %20 = vector.broadcast %cst_13 : f32 to vector<16x1xf32>
      %21 = arith.addf %19, %20 : vector<16x1xf32>
      %22 = math.rsqrt %21 : vector<16x1xf32>
      %23 = vector.broadcast %22 : vector<16x1xf32> to vector<16x32xf32>
      %24 = arith.mulf %14, %23 : vector<16x32xf32>
      %c0_14 = arith.constant 0 : index
      %c0_15 = arith.constant 0 : index
      %25 = vector.load %arg3[%c0_14, %c0_15] : memref<1x32xf32, #tpu.memory_space<vmem>>, vector<1x32xf32>
      %26 = vector.broadcast %25 : vector<1x32xf32> to vector<16x32xf32>
      %27 = arith.mulf %24, %26 : vector<16x32xf32>
      %c0_16 = arith.constant 0 : index
      %c0_17 = arith.constant 0 : index
      %28 = vector.load %arg4[%c0_16, %c0_17] : memref<1x32xf32, #tpu.memory_space<vmem>>, vector<1x32xf32>
      %29 = vector.broadcast %28 : vector<1x32xf32> to vector<16x32xf32>
      %30 = arith.addf %27, %29 : vector<16x32xf32>
      %31 = arith.truncf %30 : vector<16x32xf32> to vector<16x32xbf16>
      %c0_18 = arith.constant 0 : index
      %c0_19 = arith.constant 0 : index
      %32 = vector.load %arg7[%c0_18, %c0_19] : memref<16x32xbf16, #tpu.memory_space<vmem>>, vector<16x32xbf16>
      tpu.vector_store %arg7[%c0_18, %c0_19], %31 {strides = array<i32>} : memref<16x32xbf16, #tpu.memory_space<vmem>>, vector<16x32xbf16>,
    } else {
    }
    %c0 = arith.constant 0 : index
    %c0_1 = arith.constant 0 : index
    %3 = vector.load %arg7[%c0, %c0_1] : memref<16x32xbf16, #tpu.memory_space<vmem>>, vector<16x32xbf16>
    %c0_2 = arith.constant 0 : index
    %c0_3 = arith.constant 0 : index
    %c0_4 = arith.constant 0 : index
    %4 = vector.load %arg5[%c0_2, %c0_3, %c0_4] : memref<1x32x128xbf16, #tpu.memory_space<vmem>>, vector<1x32x128xbf16>
    %5 = vector.shape_cast %4 : vector<1x32x128xbf16> to vector<32x128xbf16>
    %cst = arith.constant dense<0.000000e+00> : vector<16x128xf32>
    %6 = tpu.matmul %3, %5, %cst {dimension_numbers = #tpu.dot_dimension_numbers<[1], [0], [0], [1], [0, 0, 1, 1], [], []>} : vector<16x32xbf16>, vector<32x128xbf16>, vector<16x128xf32> -> vector<16x128xf32>
    %c0_5 = arith.constant 0 : index
    %c0_6 = arith.constant 0 : index
    %7 = vector.load %arg6[%c0_5, %c0_6] : memref<16x128xf32, #tpu.memory_space<vmem>>, vector<16x128xf32>
    tpu.vector_store %arg6[%c0_5, %c0_6], %6 {strides = array<i32>} : memref<16x128xf32, #tpu.memory_space<vmem>>, vector<16x128xf32>,
    return
  }
  func.func @transform_0(%arg0: i32, %arg1: i32) -> (i32, i32) {
    %c0_i32 = arith.constant 0 : i32
    %c0_i32_0 = arith.constant 0 : i32
    return %arg0, %c0_i32 : i32, i32
  }
  func.func @transform_1(%arg0: i32, %arg1: i32) -> (i32, i32) {
    %c0_i32 = arith.constant 0 : i32
    %c0_i32_0 = arith.constant 0 : i32
    %c0_i32_1 = arith.constant 0 : i32
    return %c0_i32, %c0_i32_0 : i32, i32
  }
  func.func @transform_2(%arg0: i32, %arg1: i32) -> (i32, i32) {
    %c0_i32 = arith.constant 0 : i32
    %c0_i32_0 = arith.constant 0 : i32
    %c0_i32_1 = arith.constant 0 : i32
    return %c0_i32, %c0_i32_0 : i32, i32
  }
  func.func @transform_3(%arg0: i32, %arg1: i32) -> (i32, i32, i32) {
    %c0_i32 = arith.constant 0 : i32
    %c0_i32_0 = arith.constant 0 : i32
    %c0_i32_1 = arith.constant 0 : i32
    return %arg1, %c0_i32, %c0_i32_0 : i32, i32, i32
  }
  func.func @transform_4(%arg0: i32, %arg1: i32) -> (i32, i32) {
    %c0_i32 = arith.constant 0 : i32
    return %arg0, %arg1 : i32, i32
  }
}

</mosaic_0001>

<llo_original>
// kernel: tpu_custom_call.1
$region0: #{tpu_custom_call.1}
  #allocation0 [shape = 'u32[]', space=smem, size = 0x4, offset = 0x4, fixed_abs, tag = 'smem constant byte address 0x4 - core index']
  #allocation1 [shape = 'u32[144,128]{1,0:T(1,128)}', space=vmem, size = 0x12000, scoped, tag = 'internal scratch']
  #allocation2 [shape = 'bf16[16,32]{1,0:T(8,128)(2,1)}', space=vmem, size = 0x1000, scoped, tag = 'scratch operand']
  %s0 = inlined_call_operand.hbm [shape: f32[16,32], index: 0, kind: input, shape index: {}]
  %s1 = inlined_call_operand.vmem [shape: f32[1,32], index: 1, kind: input, shape index: {}]
  %s2 = inlined_call_operand.vmem [shape: f32[1,32], index: 2, kind: input, shape index: {}]
  %s3 = inlined_call_operand.hbm [shape: bf16[1,32,128], index: 3, kind: input, shape index: {}]
  %s4 = inlined_call_operand.hbm [shape: f32[16,128], index: 4, kind: output, shape index: {}]
  %s5 = sld [smem:[#allocation0]]
  $region38: #{tpu_custom_call.1} parent=0
    _
  %s7 = ssub.s32 1, %s5
  %s8 = scalar_select 0, %s7, %s5
  $region1: #{tpu_custom_call.1} parent=0
    #allocation3 [shape = 'u8[8192]{0}', space=vmem, size = 0x2000, scoped, tag = 'input window, operand 0, single buffered']
    #allocation4 [shape = 's32[1]{0}', space=sflag, size = 0x4, scoped, tag = 'scoped memory for tpu_custom_call.1']
    #allocation5 [shape = 's32[1]{0}', space=sflag, size = 0x4, scoped, tag = 'scoped memory for tpu_custom_call.1']
    #allocation6 [shape = 'u8[8192]{0}', space=vmem, size = 0x2000, scoped, tag = 'input window, operand 3, single buffered']
    #allocation7 [shape = 's32[1]{0}', space=sflag, size = 0x4, scoped, tag = 'scoped memory for tpu_custom_call.1']
    #allocation8 [shape = 'u8[8192]{0}', space=vmem, size = 0x2000, scoped, tag = 'output window, operand 0, single buffered']
    %9 = vsyncpa [#allocation4], 0
    %10 = vsyncpa [#allocation7], 0
    %11 = vsyncpa [#allocation5], 0
    // Predicated region
    $region2: #{tpu_custom_call.1} parent=1 // pred_check
      _
    $region3: #{tpu_custom_call.1} parent=1 // pred_check_branch
      %13 = sbr.rel (0) target = $region5
    $region4: #{tpu_custom_call.1} parent=1 // pred_region
      %s15 = ssub.s32 256, 256
      %16 = vsyncadd [#allocation4], %s15
      %s17 = sshll.u32 [#allocation3], 4
      %s18 = int_to_ptr.vmem [resolvable:$true] %s17
      %23 = dma.hbm_to_vmem [thread:$0]  %s0, 256, %s18, [#allocation4], 128, 128, 8
    $region5: #{tpu_custom_call.1} parent=1 // pred_fallthru
      _
    // Predicated region
    $region6: #{tpu_custom_call.1} parent=1 // pred_check
      _
    $region7: #{tpu_custom_call.1} parent=1 // pred_check_branch
      %25 = sbr.rel (0) target = $region9
    $region8: #{tpu_custom_call.1} parent=1 // pred_region
      _
    $region9: #{tpu_custom_call.1} parent=1 // pred_fallthru
      _
    // Predicated region
    $region10: #{tpu_custom_call.1} parent=1 // pred_check
      _
    $region11: #{tpu_custom_call.1} parent=1 // pred_check_branch
      %27 = sbr.rel (0) target = $region13
    $region12: #{tpu_custom_call.1} parent=1 // pred_region
      _
    $region13: #{tpu_custom_call.1} parent=1 // pred_fallthru
      _
    // Predicated region
    $region14: #{tpu_custom_call.1} parent=1 // pred_check
      _
    $region15: #{tpu_custom_call.1} parent=1 // pred_check_branch
      %29 = sbr.rel (0) target = $region17
    $region16: #{tpu_custom_call.1} parent=1 // pred_region
      %s31 = ssub.s32 256, 256
      %32 = vsyncadd [#allocation7], %s31
      %s33 = sshll.u32 [#allocation6], 4
      %s34 = int_to_ptr.vmem [resolvable:$true] %s33
      %39 = dma.hbm_to_vmem [thread:$0]  %s3, 256, %s34, [#allocation7], 64, 64, 4
    $region17: #{tpu_custom_call.1} parent=1 // pred_fallthru
      _
    // Predicated region
    $region18: #{tpu_custom_call.1} parent=1 // pred_check
      _
    $region19: #{tpu_custom_call.1} parent=1 // pred_check_branch
      %41 = sbr.rel (0) target = $region21
    $region20: #{tpu_custom_call.1} parent=1 // pred_region
      %42 = dma.done [#allocation4], 256
    $region21: #{tpu_custom_call.1} parent=1 // pred_fallthru
      _
    // Predicated region
    $region22: #{tpu_custom_call.1} parent=1 // pred_check
      _
    $region23: #{tpu_custom_call.1} parent=1 // pred_check_branch
      %44 = sbr.rel (0) target = $region25
    $region24: #{tpu_custom_call.1} parent=1 // pred_region
      %45 = dma.done [#allocation7], 256
    $region25: #{tpu_custom_call.1} parent=1 // pred_fallthru
      _
    %p47 = scmp.eq.s32.totalorder 0, 0
    // Predicated region
    $region26: #{tpu_custom_call.1} parent=1 // pred_check
      %p48 = pneg %p47
    $region27: #{tpu_custom_call.1} parent=1 // pred_check_branch
      %50 = sbr.rel (%p48) target = $region29
    $region28: #{tpu_custom_call.1} parent=1 // pred_region
      %v51 = vld [vmem:[#allocation3] sm:$0xff]
      %v52 = vld [vmem:[#allocation3 + $0x8] sm:$0xff]
      %vm53 = vcmask 261120
      %v54 = vsel %vm53, %v51, 0.0
      %55 = vadd.xlane.f32.xlu0 %v54
      %v56 = vpop.xlane.xlu0 %55
      %v57 = vsel %vm53, %v52, 0.0
      %58 = vadd.xlane.f32.xlu0 %v57
      %v59 = vpop.xlane.xlu0 %58
      %v60 = vrcp.pop 32.0
      %v61 = vmul.f32 %v56, %v60
      %v62 = vmul.f32 %v59, %v60
      %v63 = vsub.f32 %v51, %v61
      %v64 = vsub.f32 %v52, %v62
      %v65 = vmul.f32 %v63, %v63
      %v66 = vmul.f32 %v64, %v64
      %v67 = vsel %vm53, %v65, 0.0
      %68 = vadd.xlane.f32.xlu0 %v67
      %v69 = vpop.xlane.xlu0 %68
      %v70 = vsel %vm53, %v66, 0.0
      %71 = vadd.xlane.f32.xlu0 %v70
      %v72 = vpop.xlane.xlu0 %71
      %v73 = vmul.f32 %v69, %v60
      %v74 = vmul.f32 %v72, %v60
      %v75 = vadd.f32 %v73, 1e-05
      %v76 = vadd.f32 %v74, 1e-05
      %v77 = vrsqrt.pop %v75
      %v78 = vrsqrt.pop %v76
      %v79 = vmul.f32 %v63, %v77
      %v80 = vmul.f32 %v64, %v78
      %v81 = vld [vmem:[%s1] sm:$0x1]
      %v83 = vlaneseq
      %v84 = vshrl.u32 %v83, 7
      %v85 = vsub.s32 0, %v84
      %v86 = vrot.slane %v81, %v85
      %v88 = vmul.f32 %v79, %v86
      %v89 = vmul.f32 %v80, %v86
      %v90 = vld [vmem:[%s2] sm:$0x1]
      %v92 = vlaneseq
      %v93 = vshrl.u32 %v92, 7
      %v94 = vsub.s32 0, %v93
      %v95 = vrot.slane %v90, %v94
      %v97 = vadd.f32 %v88, %v95
      %v98 = vadd.f32 %v89, %v95
      %v99 = vpack.c.bf16 %v98, %v97
      %v101 = vunpack.c.l.b16 %v99
      %v102 = vunpack.c.h.b16 %v99
      %v103 = vpack.c.b16 %v101, %v101
      %v104 = vpack.c.b16 %v102, %v102
      %vm107 = vcmask 257024
      %108 = vst.msk [vmem:[#allocation2] sm:$0xf] %vm107, %v103
      %109 = vst.msk [vmem:[#allocation2 + $0x4] sm:$0xf] %vm107, %v104
    $region29: #{tpu_custom_call.1} parent=1 // pred_fallthru
      _
    %v110 = vld [vmem:[#allocation2] sm:$0xf]
    %v111 = vld [vmem:[#allocation2 + $0x4] sm:$0xf]
    %v112 = vld [vmem:[#allocation6] sm:$0xf]
    %v113 = vld [vmem:[#allocation6 + $0x4] sm:$0xf]
    %v114 = vld [vmem:[#allocation6 + $0x8] sm:$0xf]
    %v115 = vld [vmem:[#allocation6 + $0xc] sm:$0xf]
    %v118 = vunpack.c.l.b16 %v110
    %v119 = vunpack.c.l.b16 %v111
    %v120 = vpack.c.b16 %v119, %v118
    %v125 = vunpack.c.l.b16 %v112
    %v126 = vunpack.c.l.b16 %v113
    %v127 = vunpack.c.l.b16 %v114
    %v128 = vunpack.c.l.b16 %v115
    %v129 = vpack.c.b16 %v126, %v125
    %v130 = vpack.c.b16 %v128, %v127
    %vm133 = vcmask 261120
    %v135 = vsel %vm133, %v120, 0
    %137 = vmatprep.subr.bf16.mxu0 0
    %138 = vmatpush1.bf16.msra.mxu0 0
    %139 = vmatprep.subr.bf16.mxu0 0
    %140 = vmatpush1.bf16.msra.mxu0 0
    %141 = vmatprep.subr.bf16.mxu0 0
    %142 = vmatpush1.bf16.msra.mxu0 0
    %143 = vmatprep.subr.bf16.mxu0 0
    %144 = vmatpush1.bf16.msra.mxu0 0
    %145 = vmatprep.subr.bf16.mxu0 0
    %146 = vmatpush1.bf16.msra.mxu0 0
    %147 = vmatprep.subr.bf16.mxu0 0
    %148 = vmatpush1.bf16.msra.mxu0 0
    %149 = vmatprep.subr.bf16.mxu0 0
    %150 = vmatpush1.bf16.msra.mxu0 %v130
    %151 = vmatprep.subr.bf16.mxu0 0
    %152 = vmatpush1.bf16.msra.mxu0 %v129
    %153 = vmatprep.subr.bf16.mxu0 0
    %154 = vmatpush2.bf16.msra.mxu0 0
    %155 = vmatprep.subr.bf16.mxu0 0
    %156 = vmatpush2.bf16.msra.mxu0 0
    %157 = vmatprep.subr.bf16.mxu0 0
    %158 = vmatpush2.bf16.msra.mxu0 0
    %159 = vmatprep.subr.bf16.mxu0 0
    %160 = vmatpush2.bf16.msra.mxu0 0
    %161 = vmatprep.subr.bf16.mxu0 0
    %162 = vmatpush2.bf16.msra.mxu0 0
    %163 = vmatprep.subr.bf16.mxu0 0
    %164 = vmatpush2.bf16.msra.mxu0 0
    %165 = vmatprep.subr.bf16.mxu0 0
    %166 = vmatpush2.bf16.msra.mxu0 0
    %167 = vmatprep.subr.bf16.mxu0 0
    %168 = vmatpush2.bf16.msra.mxu0 0
    %169 = vmatprep.mubr.bf16.mxu0 0
    %170 = vmatmul.mubr.bf16.gmra.mxu0 %v135
    %v171 = vpop.f32.mrf.mxu0
    %v172 = vadd.f32 0.0, %v171
    %v173 = vpop.f32.mrf.mxu0
    %v174 = vpop.f32.mrf.mxu0
    %v175 = vadd.f32 0.0, %v174
    %v176 = vpop.f32.mrf.mxu0
    %177 = vdwg.mxu0
    %178 = vst [vmem:[#allocation8] sm:$0xff] %v172
    %179 = vst [vmem:[#allocation8 + $0x8] sm:$0xff] %v175
    // Predicated region
    $region30: #{tpu_custom_call.1} parent=1 // pred_check
      _
    $region31: #{tpu_custom_call.1} parent=1 // pred_check_branch
      %181 = sbr.rel (0) target = $region33
    $region32: #{tpu_custom_call.1} parent=1 // pred_region
      %s183 = ssub.s32 256, 256
      %184 = vsyncadd [#allocation5], %s183
      %s185 = sshll.u32 [#allocation8], 4
      %s186 = int_to_ptr.vmem [resolvable:$true] %s185
      %191 = dma.vmem_to_hbm [thread:$0]  %s186, 256, %s4, [#allocation5], 128, 128, 8
    $region33: #{tpu_custom_call.1} parent=1 // pred_fallthru
      _
    // Predicated region
    $region34: #{tpu_custom_call.1} parent=1 // pred_check
      _
    $region35: #{tpu_custom_call.1} parent=1 // pred_check_branch
      %193 = sbr.rel (0) target = $region37
    $region36: #{tpu_custom_call.1} parent=1 // pred_region
      %194 = dma.done [#allocation5], 256
    $region37: #{tpu_custom_call.1} parent=1 // pred_fallthru
      _
    %195 = vsyncpa [#allocation4], 1
    %196 = vsyncpa [#allocation7], 1
    %197 = vsyncpa [#allocation5], 1

</llo_original>
